<compile_context>
chip_gen: v6e
topology: v6e:2x2x1
jax: 0.10.0
libtpu: 0.0.40
codegen_flags: <defaults>
</compile_context>

<pallas_src>
import functools

import jax
import jax.numpy as jnp
from jax import lax
from jax.experimental import pallas as pl
from jax.experimental.pallas import tpu as pltpu


def _round_up(x, m):
    return (x + m - 1) // m * m


# --------------------------- linear projections ------------------------------

def _matmul_small_kernel(x_ref, w_ref, *refs, add_bias):
    if add_bias:
        b_ref, o_ref = refs
    else:
        (o_ref,) = refs
    out = jnp.dot(x_ref[...], w_ref[...], preferred_element_type=jnp.float32)
    if add_bias:
        out = out + b_ref[...].astype(jnp.float32)
    o_ref[...] = out.astype(o_ref.dtype)


def _matmul_tiled_kernel(x_ref, w_ref, *refs, add_bias):
    if add_bias:
        b_ref, o_ref, acc_ref = refs
    else:
        o_ref, acc_ref = refs

    @pl.when(pl.program_id(2) == 0)
    def _init():
        acc_ref[...] = jnp.zeros_like(acc_ref)

    # MXU operands stay in the input dtype (bf16-native on v6e/v7x); the
    # accumulation is f32 via preferred_element_type.
    acc_ref[...] += jnp.dot(x_ref[...], w_ref[...],
                            preferred_element_type=jnp.float32)

    @pl.when(pl.program_id(2) == pl.num_programs(2) - 1)
    def _finalize():
        out = acc_ref[...]
        if add_bias:
            out = out + b_ref[...].astype(jnp.float32)
        o_ref[...] = out.astype(o_ref.dtype)


def linear(x, w, b=None, *, tm=512, tn=512, tk=512,
           single_block_bytes=2 * 1024 * 1024):
    """x: (M, K) @ w: (K, N) (+ optional bias).

    Small shapes take a single-block path with full-extent BlockSpecs: no
    host-side jnp.pad of x/w and no out[:M, :N] slice, i.e. no extra HBM
    read+write passes around a memory-bound matmul. Large shapes take the
    tiled, pipelined path (512-wide tiles; working set ~7-10 MiB in f32,
    within every generation's default scoped VMEM, including v7x's 32 MiB).
    """
    M, K = x.shape
    N = w.shape[1]
    add_bias = b is not None
    itemsize = jnp.dtype(x.dtype).itemsize
    footprint = (M * K + K * N + 2 * M * N) * itemsize + M * N * 4

    if footprint <= single_block_bytes:
        inputs = [x, w]
        in_specs = [pl.BlockSpec((M, K), lambda i: (0, 0)),
                    pl.BlockSpec((K, N), lambda i: (0, 0))]
        if add_bias:
            inputs.append(b.reshape(1, N))
            in_specs.append(pl.BlockSpec((1, N), lambda i: (0, 0)))
        return pl.pallas_call(
            functools.partial(_matmul_small_kernel, add_bias=add_bias),
            out_shape=jax.ShapeDtypeStruct((M, N), x.dtype),
            grid=(1,),
            in_specs=in_specs,
            out_specs=pl.BlockSpec((M, N), lambda i: (0, 0)),
        )(*inputs)

    # ----- tiled path (large shapes) -----
    # MXU / lane aligned tiles (tm % 8 == 0, tk/tn % 128 == 0), shrunk to the
    # (padded) problem so smaller shapes do not over-pad.
    tm = min(tm, _round_up(M, 8))
    tk = min(tk, _round_up(K, 128))
    tn = min(tn, _round_up(N, 128))
    Mp, Kp, Np = _round_up(M, tm), _round_up(K, tk), _round_up(N, tn)

    # TODO(synk): for production shapes that are not tile-divisible, handle the
    # ragged last k/n tile in-kernel instead of this host-side pad/slice.
    xp = x if (Mp == M and Kp == K) else jnp.pad(x, ((0, Mp - M), (0, Kp - K)))
    wp = w if (Kp == K and Np == N) else jnp.pad(w, ((0, Kp - K), (0, Np - N)))

    inputs = [xp, wp]
    in_specs = [
        pl.BlockSpec((tm, tk), lambda i, j, k: (i, k)),
        pl.BlockSpec((tk, tn), lambda i, j, k: (k, j)),
    ]
    if add_bias:
        bp = b if Np == N else jnp.pad(b, (0, Np - N))
        inputs.append(bp.reshape(1, Np))
        in_specs.append(pl.BlockSpec((1, tn), lambda i, j, k: (0, j)))

    out = pl.pallas_call(
        functools.partial(_matmul_tiled_kernel, add_bias=add_bias),
        out_shape=jax.ShapeDtypeStruct((Mp, Np), x.dtype),
        grid=(Mp // tm, Np // tn, Kp // tk),
        in_specs=in_specs,
        out_specs=pl.BlockSpec((tm, tn), lambda i, j, k: (i, j)),
        scratch_shapes=[pltpu.VMEM((tm, tn), jnp.float32)],
        compiler_params=pltpu.CompilerParams(
            dimension_semantics=("parallel", "parallel", "arbitrary")),
    )(*inputs)

    if Mp != M or Np != N:
        out = out[:M, :N]
    return out


# ----- attention: fused LayerNorms + softmax + residual + output projection --

def _attn_kernel(q_ref, k_ref, v_ref, ln_ref, wp_ref, bp_ref, o_ref,
                 qs_ref, ks_ref, vs_ref, *, num_heads, residual, has_cls):
    Nq, C = q_ref.shape
    Nk = k_ref.shape[0]
    Co = wp_ref.shape[1]
    D = C // num_heads
    dot_dt = q_ref.dtype

    # Per-head-group averaging matrix P (C, C): P[c, c'] = 1/D when c and c'
    # belong to the same head.  LayerNorm statistics become two lane-dense MXU
    # matmuls instead of 8/128-lane cross-lane reductions.
    ci = lax.broadcasted_iota(jnp.int32, (C, C), 0) // D
    cj = lax.broadcasted_iota(jnp.int32, (C, C), 1) // D
    P = (ci == cj).astype(jnp.float32) * jnp.float32(1.0 / D)

    def layer_norm(x, idx):
        g = ln_ref[2 * idx:2 * idx + 1, :].astype(jnp.float32)       # (1, C)
        b = ln_ref[2 * idx + 1:2 * idx + 2, :].astype(jnp.float32)   # (1, C)
        xf = x.astype(jnp.float32)
        mean = jnp.dot(xf, P, preferred_element_type=jnp.float32)    # per-head mean
        xc = xf - mean
        var = jnp.dot(xc * xc, P, preferred_element_type=jnp.float32)
        return xc * lax.rsqrt(var + 1e-5) * g + b

    # Fused post-pool LayerNorms (no extra HBM round trip for q/k/v).  The
    # softmax scale is already folded into k's gamma/beta by the wrapper.
    qn = layer_norm(q_ref[...], 0)    # (Nq, C) f32, unscaled (used for residual)
    kn = layer_norm(k_ref[...], 1)    # (Nk, C) f32, pre-scaled by `scale`
    vn = layer_norm(v_ref[...], 2)    # (Nk, C) f32

    # Lane-dense VMEM staging so the per-head slices below are plain ref reads.
    qs_ref[...] = qn.astype(dot_dt)
    ks_ref[...] = kn.astype(dot_dt)
    vs_ref[...] = vn.astype(dot_dt)

    acc = jnp.zeros((Nq, Co), jnp.float32)

    # Residual pooling (cls row excluded with a single iota row-mask) is folded
    # through the output projection: (o + mask*qn) @ W == o @ W + (mask*qn) @ W.
    if residual:
        if has_cls:
            row = lax.broadcasted_iota(jnp.int32, (Nq, 1), 0)
            q_res = jnp.where(row > 0, qn, 0.0)
        else:
            q_res = qn
        acc = acc + jnp.dot(q_res.astype(dot_dt), wp_ref[...],
                            preferred_element_type=jnp.float32)

    # Per-head attention (unrolled; head_dim is tiny so MXU fill is irrelevant
    # here — the layout/store work above is what matters at MViT sizes).
    for h in range(num_heads):
        lo, hi = h * D, (h + 1) * D
        qh = qs_ref[:, lo:hi]                                        # (Nq, D)
        kh = ks_ref[:, lo:hi]                                        # (Nk, D)
        vh = vs_ref[:, lo:hi]                                        # (Nk, D)
        s = lax.dot_general(qh, kh, (((1,), (1,)), ((), ())),
                            preferred_element_type=jnp.float32)      # (Nq, Nk)
        s = s - jnp.max(s, axis=-1, keepdims=True)
        p = jnp.exp(s)
        denom = jnp.sum(p, axis=-1, keepdims=True)
        p = p * pl.reciprocal(denom, approx=False)                   # exact for parity
        oh = jnp.dot(p.astype(dot_dt), vh,
                     preferred_element_type=jnp.float32)             # (Nq, D)
        acc = acc + jnp.dot(oh.astype(dot_dt), wp_ref[lo:hi, :],
                            preferred_element_type=jnp.float32)      # fused proj

    out = acc + bp_ref[...].astype(jnp.float32)
    # Single lane-dense store of the projected output.
    o_ref[...] = out.astype(o_ref.dtype)


def attention(q, k, v, ln_params, w_proj, b_proj, *, num_heads,
              residual=True, has_cls=True):
    """q: (B, Nq, C), k/v: (B, Nk, C) lane-dense; ln_params: (6, C) head-tiled
    LayerNorm gamma/beta (with the softmax scale folded into k's); w_proj:
    (C, Co), b_proj: (Co,).  Returns the PROJECTED output (B, Nq, Co)."""
    B, Nq, C = q.shape
    Nk = k.shape[1]
    Co = w_proj.shape[1]
    kern = functools.partial(_attn_kernel, num_heads=num_heads,
                             residual=residual, has_cls=has_cls)
    # grid=(B,) keeps a 'parallel' extent of B (>=2 balances v7x's two TCs);
    # each step already covers all heads + LN + the fused output projection.
    # TODO(synk): for production MViT sizes (Nq~3k, Nk~800+) add an Nq tile
    # axis ('parallel') and an Nk axis ('arbitrary') with flash-style online
    # softmax, and re-budget VMEM for v7x's 64 MiB.
    return pl.pallas_call(
        kern,
        out_shape=jax.ShapeDtypeStruct((B, Nq, Co), q.dtype),
        grid=(B,),
        in_specs=[
            pl.BlockSpec((None, Nq, C), lambda b: (b, 0, 0)),
            pl.BlockSpec((None, Nk, C), lambda b: (b, 0, 0)),
            pl.BlockSpec((None, Nk, C), lambda b: (b, 0, 0)),
            pl.BlockSpec((6, C), lambda b: (0, 0)),
            pl.BlockSpec((C, Co), lambda b: (0, 0)),
            pl.BlockSpec((1, Co), lambda b: (0, 0)),
        ],
        out_specs=pl.BlockSpec((None, Nq, Co), lambda b: (b, 0, 0)),
        scratch_shapes=[pltpu.VMEM((Nq, C), q.dtype),
                        pltpu.VMEM((Nk, C), q.dtype),
                        pltpu.VMEM((Nk, C), q.dtype)],
        compiler_params=pltpu.CompilerParams(dimension_semantics=("parallel",)),
    )(q, k, v, ln_params, w_proj, b_proj.reshape(1, Co))


# --------------------------- forward-pass glue ------------------------------

def attention_pool(t, conv_w_head, hw_shape, stride, num_heads, has_cls=True):
    """t: (B, N, C) lane-dense with N = 1 + H*W (cls first), C = num_heads*hd.

    Depthwise 3x3 pooling conv applied on the un-split (B, H, W, C) tensor with
    the per-head weights tiled across heads (mathematically identical to the
    per-head conv, but lane-dense and with no head-split transposes)."""
    B, N, C = t.shape
    H, W = hw_shape
    if has_cls:
        cls_tok, body = t[:, :1, :], t[:, 1:, :]
    else:
        body = t
    x = body.reshape(B, H, W, C)
    w_tiled = jnp.tile(conv_w_head, (1, 1, 1, num_heads))            # (3,3,1,C)
    # TODO(synk): strided depthwise 3x3 pooling conv kept as plain lax glue
    # (no clean small Pallas formulation); matmuls/softmax/LN run in Pallas.
    y = lax.conv_general_dilated(
        x, w_tiled, window_strides=stride, padding=((1, 1), (1, 1)),
        dimension_numbers=("NHWC", "HWIO", "NHWC"), feature_group_count=C)
    Ho, Wo = y.shape[1], y.shape[2]
    y = y.reshape(B, Ho * Wo, C)
    if has_cls:
        y = jnp.concatenate([cls_tok, y], axis=1)
    return y, (Ho, Wo)


def multi_scale_attention(query, x, params, hw_shape, num_heads, dim_out,
                          has_cls=True, residual=True):
    """Matches MultiScaleAttention.forward((query, x), hw_shape) with defaults:
    mode='conv', pool_first=False, rel_pos_spatial=False, qkv_bias=False,
    kernel_q=kernel_kv=(3,3), stride_q=(1,1), stride_kv=(2,2).

    Works in f32 or bf16 (pass bf16 inputs/params for bf16 HBM/MXU traffic)."""
    B, N, dim = x.shape
    hd = dim_out // num_heads
    scale = hd ** (-0.5)

    # qkv / qkv2 projections stay lane-dense; k and v are channel slices of the
    # qkv output (no reshape(B,N,3,H,hd)/permute relayouts at all).
    qkv = linear(x.reshape(B * N, dim), params["w_qkv"]).reshape(B, N, 3 * dim_out)
    k = qkv[:, :, dim_out:2 * dim_out]
    v = qkv[:, :, 2 * dim_out:]
    q = linear(query.reshape(B * N, dim), params["w_qkv2"]).reshape(B, N, dim_out)

    q, q_shape = attention_pool(q, params["w_pool_q"], hw_shape, (1, 1),
                                num_heads, has_cls)
    k, _ = attention_pool(k, params["w_pool_k"], hw_shape, (2, 2),
                          num_heads, has_cls)
    v, _ = attention_pool(v, params["w_pool_v"], hw_shape, (2, 2),
                          num_heads, has_cls)

    # Head-tiled LayerNorm params for the fused in-kernel LN.  The softmax
    # scale is folded into k's gamma/beta here (free: residual uses q, not k).
    tile = lambda p: jnp.tile(p, num_heads)                          # (hd,)->(C,)
    ln_params = jnp.stack([tile(params["g_q"]), tile(params["b_q"]),
                           tile(params["g_k"]) * scale, tile(params["b_k"]) * scale,
                           tile(params["g_v"]), tile(params["b_v"])], axis=0)

    # Attention kernel returns the already-projected (B, Nq, dim_out) output
    # (w_proj/b_proj fused in the kernel epilogue — no extra HBM round trip).
    out = attention(q, k, v, ln_params, params["w_proj"], params["b_proj"],
                    num_heads=num_heads, residual=residual, has_cls=has_cls)
    return out, q_shape


# ------------------------- pure-JAX reference check ------------------------

def reference_forward(query, x, params, hw_shape, num_heads, dim_out):
    B, N, dim = x.shape
    hd = dim_out // num_heads
    scale = hd ** (-0.5)
    qkv = (x @ params["w_qkv"]).reshape(B, N, 3, num_heads, hd).transpose(2, 0, 3, 1, 4)
    k, v = qkv[1], qkv[2]
    q = (query @ params["w_qkv2"]).reshape(B, N, num_heads, hd).transpose(0, 2, 1, 3)

    def pool(t, w, stride, g, b):
        cls_tok, tt = t[:, :, :1, :], t[:, :, 1:, :]
        H, W = hw_shape
        xi = tt.reshape(B * num_heads, H, W, hd)
        y = lax.conv_general_dilated(xi, w, stride, ((1, 1), (1, 1)),
                                     dimension_numbers=("NHWC", "HWIO", "NHWC"),
                                     feature_group_count=hd)
        Ho, Wo = y.shape[1], y.shape[2]
        y = y.reshape(B, num_heads, Ho * Wo, hd)
        y = jnp.concatenate([cls_tok, y], axis=2)
        mean = y.mean(-1, keepdims=True)
        var = ((y - mean) ** 2).mean(-1, keepdims=True)
        y = (y - mean) / jnp.sqrt(var + 1e-5) * g + b
        return y, (Ho, Wo)

    q, q_shape = pool(q, params["w_pool_q"], (1, 1), params["g_q"], params["b_q"])
    k, _ = pool(k, params["w_pool_k"], (2, 2), params["g_k"], params["b_k"])
    v, _ = pool(v, params["w_pool_v"], (2, 2), params["g_v"], params["b_v"])
    attn = (q * scale) @ jnp.swapaxes(k, -2, -1)
    attn = jax.nn.softmax(attn, axis=-1)
    o = attn @ v
    o = o.at[:, :, 1:, :].add(q[:, :, 1:, :])
    Nq = o.shape[2]
    o = o.transpose(0, 2, 1, 3).reshape(B, Nq, dim_out)
    o = o @ params["w_proj"] + params["b_proj"]
    return o, q_shape


# --------------------------------- main -------------------------------------

if __name__ == "__main__":
    B, H, W = 2, 8, 8
    dim, dim_out, num_heads = 32, 32, 4
    hd = dim_out // num_heads
    N = H * W + 1                      # has_cls_embed=True -> 1 + H*W tokens

    key = jax.random.PRNGKey(0)
    ks = jax.random.split(key, 9)

    def init(k, shape, std=0.02):
        return (std * jax.random.normal(k, shape)).astype(jnp.float32)

    params = dict(
        w_qkv=init(ks[0], (dim, 3 * dim_out)),        # nn.Linear(dim, dim_out*3), no bias
        w_qkv2=init(ks[1], (dim, dim_out)),           # nn.Linear(dim, dim_out), no bias
        w_proj=init(ks[2], (dim_out, dim_out)),       # nn.Linear(dim_out, dim_out)
        b_proj=init(ks[3], (dim_out,)),
        w_pool_q=init(ks[4], (3, 3, 1, hd)),          # depthwise Conv2d(hd, hd, 3, groups=hd)
        w_pool_k=init(ks[5], (3, 3, 1, hd)),
        w_pool_v=init(ks[6], (3, 3, 1, hd)),
        g_q=jnp.ones((hd,), jnp.float32), b_q=jnp.zeros((hd,), jnp.float32),
        g_k=jnp.ones((hd,), jnp.float32), b_k=jnp.zeros((hd,), jnp.float32),
        g_v=jnp.ones((hd,), jnp.float32), b_v=jnp.zeros((hd,), jnp.float32),
    )

    query = jax.random.normal(ks[7], (B, N, dim), jnp.float32)
    x = jax.random.normal(ks[8], (B, N, dim), jnp.float32)

    out, q_shape = multi_scale_attention(query, x, params, (H, W),
                                         num_heads=num_heads, dim_out=dim_out)
    out = jax.block_until_ready(out)

    ref_out, ref_q_shape = reference_forward(query, x, params, (H, W),
                                             num_heads, dim_out)
    assert tuple(q_shape) == tuple(ref_q_shape)
    err = float(jnp.max(jnp.abs(out - ref_out)))
    assert err < 1e-3, f"mismatch vs reference: {err}"
    print("KERNEL_OK")
</pallas_src>

<mosaic_0001>
module attributes {stable_mosaic.version = 11 : i64} {
  func.func @_matmul_small_kernel(%arg0: i32, %arg1: memref<130x32xf32, #tpu.memory_space<vmem>>, %arg2: memref<32x96xf32, #tpu.memory_space<vmem>>, %arg3: memref<130x96xf32, #tpu.memory_space<vmem>>) attributes {dimension_semantics = [#tpu.dimension_semantics<arbitrary>], iteration_bounds = array<i64: 1>, scalar_prefetch = 0 : i64, scratch_operands = 0 : i64, tpu.core_type = #tpu.core_type<tc>, window_params = [{pipeline_mode = #tpu.pipeline_mode<synchronous>, transform_indices = @transform_0, window_bounds = array<i64: 130, 32>}, {pipeline_mode = #tpu.pipeline_mode<synchronous>, transform_indices = @transform_1, window_bounds = array<i64: 32, 96>}, {pipeline_mode = #tpu.pipeline_mode<synchronous>, transform_indices = @transform_2, window_bounds = array<i64: 130, 96>}]} {
    %c0 = arith.constant 0 : index
    %c0_0 = arith.constant 0 : index
    %0 = vector.load %arg1[%c0, %c0_0] : memref<130x32xf32, #tpu.memory_space<vmem>>, vector<130x32xf32>
    %c0_1 = arith.constant 0 : index
    %c0_2 = arith.constant 0 : index
    %1 = vector.load %arg2[%c0_1, %c0_2] : memref<32x96xf32, #tpu.memory_space<vmem>>, vector<32x96xf32>
    %cst = arith.constant dense<0.000000e+00> : vector<130x96xf32>
    %2 = tpu.matmul %0, %1, %cst {dimension_numbers = #tpu.dot_dimension_numbers<[1], [0], [0], [1], [0, 0, 1, 1], [], []>} : vector<130x32xf32>, vector<32x96xf32>, vector<130x96xf32> -> vector<130x96xf32>
    %c0_3 = arith.constant 0 : index
    %c0_4 = arith.constant 0 : index
    %3 = vector.load %arg3[%c0_3, %c0_4] : memref<130x96xf32, #tpu.memory_space<vmem>>, vector<130x96xf32>
    tpu.vector_store %arg3[%c0_3, %c0_4], %2 {strides = array<i32>} : memref<130x96xf32, #tpu.memory_space<vmem>>, vector<130x96xf32>,
    return
  }
  func.func @transform_0(%arg0: i32) -> (i32, i32) {
    %c0_i32 = arith.constant 0 : i32
    %c0_i32_0 = arith.constant 0 : i32
    %c0_i32_1 = arith.constant 0 : i32
    return %c0_i32, %c0_i32_0 : i32, i32
  }
  func.func @transform_1(%arg0: i32) -> (i32, i32) {
    %c0_i32 = arith.constant 0 : i32
    %c0_i32_0 = arith.constant 0 : i32
    %c0_i32_1 = arith.constant 0 : i32
    return %c0_i32, %c0_i32_0 : i32, i32
  }
  func.func @transform_2(%arg0: i32) -> (i32, i32) {
    %c0_i32 = arith.constant 0 : i32
    %c0_i32_0 = arith.constant 0 : i32
    %c0_i32_1 = arith.constant 0 : i32
    return %c0_i32, %c0_i32_0 : i32, i32
  }
}

</mosaic_0001>

<llo_original>
// kernel: tpu_custom_call.1
$region0: #{tpu_custom_call.1}
  #allocation0 [shape = 'u32[]', space=smem, size = 0x4, offset = 0x4, fixed_abs, tag = 'smem constant byte address 0x4 - core index']
  #allocation1 [shape = 'u32[144,128]{1,0:T(1,128)}', space=vmem, size = 0x12000, scoped, tag = 'internal scratch']
  %s0 = inlined_call_operand.vmem [shape: f32[130,32], index: 0, kind: input, shape index: {}]
  %s1 = inlined_call_operand.vmem [shape: f32[32,96], index: 1, kind: input, shape index: {}]
  %s2 = inlined_call_operand.hbm [shape: f32[130,96], index: 2, kind: output, shape index: {}]
  %s3 = sld [smem:[#allocation0]]
  $region18: #{tpu_custom_call.1} parent=0
    _
  %s5 = ssub.s32 1, %s3
  %s6 = scalar_select 0, %s5, %s3
  $region1: #{tpu_custom_call.1} parent=0
    #allocation2 [shape = 'u8[69632]{0}', space=vmem, size = 0x11000, scoped, tag = 'output window, operand 0, single buffered']
    #allocation3 [shape = 's32[1]{0}', space=sflag, size = 0x4, scoped, tag = 'scoped memory for tpu_custom_call.1']
    %7 = vsyncpa [#allocation3], 0
    // Predicated region
    $region2: #{tpu_custom_call.1} parent=1 // pred_check
      _
    $region3: #{tpu_custom_call.1} parent=1 // pred_check_branch
      %9 = sbr.rel (0) target = $region5
    $region4: #{tpu_custom_call.1} parent=1 // pred_region
      _
    $region5: #{tpu_custom_call.1} parent=1 // pred_fallthru
      _
    // Predicated region
    $region6: #{tpu_custom_call.1} parent=1 // pred_check
      _
    $region7: #{tpu_custom_call.1} parent=1 // pred_check_branch
      %11 = sbr.rel (0) target = $region9
    $region8: #{tpu_custom_call.1} parent=1 // pred_region
      _
    $region9: #{tpu_custom_call.1} parent=1 // pred_fallthru
      _
    %v12 = vld [vmem:[%s0] sm:$0xff]
    %v13 = vld [vmem:[%s0 + $0x8] sm:$0xff]
    %v14 = vld [vmem:[%s0 + $0x10] sm:$0xff]
    %v15 = vld [vmem:[%s0 + $0x18] sm:$0xff]
    %v16 = vld [vmem:[%s0 + $0x20] sm:$0xff]
    %v17 = vld [vmem:[%s0 + $0x28] sm:$0xff]
    %v18 = vld [vmem:[%s0 + $0x30] sm:$0xff]
    %v19 = vld [vmem:[%s0 + $0x38] sm:$0xff]
    %v20 = vld [vmem:[%s0 + $0x40] sm:$0xff]
    %v21 = vld [vmem:[%s0 + $0x48] sm:$0xff]
    %v22 = vld [vmem:[%s0 + $0x50] sm:$0xff]
    %v23 = vld [vmem:[%s0 + $0x58] sm:$0xff]
    %v24 = vld [vmem:[%s0 + $0x60] sm:$0xff]
    %v25 = vld [vmem:[%s0 + $0x68] sm:$0xff]
    %v26 = vld [vmem:[%s0 + $0x70] sm:$0xff]
    %v27 = vld [vmem:[%s0 + $0x78] sm:$0xff]
    %v28 = vld [vmem:[%s0 + $0x80] sm:$0x3]
    %v29 = vld [vmem:[%s1] sm:$0xff]
    %v30 = vld [vmem:[%s1 + $0x8] sm:$0xff]
    %v31 = vld [vmem:[%s1 + $0x10] sm:$0xff]
    %v32 = vld [vmem:[%s1 + $0x18] sm:$0xff]
    %vm33 = vcmask 261120
    %v35 = vsel %vm33, %v12, 0
    %v38 = vsel %vm33, %v13, 0
    %v41 = vsel %vm33, %v14, 0
    %v44 = vsel %vm33, %v15, 0
    %v47 = vsel %vm33, %v16, 0
    %v50 = vsel %vm33, %v17, 0
    %v53 = vsel %vm33, %v18, 0
    %v56 = vsel %vm33, %v19, 0
    %v59 = vsel %vm33, %v20, 0
    %v62 = vsel %vm33, %v21, 0
    %v65 = vsel %vm33, %v22, 0
    %v68 = vsel %vm33, %v23, 0
    %v71 = vsel %vm33, %v24, 0
    %v74 = vsel %vm33, %v25, 0
    %v77 = vsel %vm33, %v26, 0
    %v80 = vsel %vm33, %v27, 0
    %v83 = vsel %vm33, %v28, 0
    %85 = vmatprep.subr.mxu0 0.0
    %86 = vmatpush1.msra.mxu0 0.0
    %87 = vmatprep.subr.mxu0 0.0
    %88 = vmatpush1.msra.mxu0 0.0
    %89 = vmatprep.subr.mxu0 0.0
    %90 = vmatpush1.msra.mxu0 0.0
    %91 = vmatprep.subr.mxu0 0.0
    %92 = vmatpush1.msra.mxu0 0.0
    %93 = vmatprep.subr.mxu0 0.0
    %94 = vmatpush1.msra.mxu0 0.0
    %95 = vmatprep.subr.mxu0 0.0
    %96 = vmatpush1.msra.mxu0 0.0
    %97 = vmatprep.subr.mxu0 0.0
    %98 = vmatpush1.msra.mxu0 0.0
    %99 = vmatprep.subr.mxu0 0.0
    %100 = vmatpush1.msra.mxu0 0.0
    %101 = vmatprep.subr.mxu0 0.0
    %102 = vmatpush1.msra.mxu0 0.0
    %103 = vmatprep.subr.mxu0 0.0
    %104 = vmatpush1.msra.mxu0 0.0
    %105 = vmatprep.subr.mxu0 0.0
    %106 = vmatpush1.msra.mxu0 0.0
    %107 = vmatprep.subr.mxu0 0.0
    %108 = vmatpush1.msra.mxu0 0.0
    %109 = vmatprep.subr.mxu0 0.0
    %110 = vmatpush1.msra.mxu0 %v32
    %111 = vmatprep.subr.mxu0 0.0
    %112 = vmatpush1.msra.mxu0 %v31
    %113 = vmatprep.subr.mxu0 0.0
    %114 = vmatpush1.msra.mxu0 %v30
    %115 = vmatprep.subr.mxu0 0.0
    %116 = vmatpush1.msra.mxu0 %v29
    %117 = vmatprep.subr.mxu0 0.0
    %118 = vmatpush2.msra.mxu0 0.0
    %119 = vmatprep.subr.mxu0 0.0
    %120 = vmatpush2.msra.mxu0 0.0
    %121 = vmatprep.subr.mxu0 0.0
    %122 = vmatpush2.msra.mxu0 0.0
    %123 = vmatprep.subr.mxu0 0.0
    %124 = vmatpush2.msra.mxu0 0.0
    %125 = vmatprep.subr.mxu0 0.0
    %126 = vmatpush2.msra.mxu0 0.0
    %127 = vmatprep.subr.mxu0 0.0
    %128 = vmatpush2.msra.mxu0 0.0
    %129 = vmatprep.subr.mxu0 0.0
    %130 = vmatpush2.msra.mxu0 0.0
    %131 = vmatprep.subr.mxu0 0.0
    %132 = vmatpush2.msra.mxu0 0.0
    %133 = vmatprep.subr.mxu0 0.0
    %134 = vmatpush2.msra.mxu0 0.0
    %135 = vmatprep.subr.mxu0 0.0
    %136 = vmatpush2.msra.mxu0 0.0
    %137 = vmatprep.subr.mxu0 0.0
    %138 = vmatpush2.msra.mxu0 0.0
    %139 = vmatprep.subr.mxu0 0.0
    %140 = vmatpush2.msra.mxu0 0.0
    %141 = vmatprep.subr.mxu0 0.0
    %142 = vmatpush2.msra.mxu0 0.0
    %143 = vmatprep.subr.mxu0 0.0
    %144 = vmatpush2.msra.mxu0 0.0
    %145 = vmatprep.subr.mxu0 0.0
    %146 = vmatpush2.msra.mxu0 0.0
    %147 = vmatprep.subr.mxu0 0.0
    %148 = vmatpush2.msra.mxu0 0.0
    %149 = vmatprep.mubr.f32.mxu0 0.0
    %150 = vmatmul.mubr.f32.gmra.mxu0 %v35
    %v151 = vpop.f32.mrf.mxu0
    %v152 = vadd.f32 0.0, %v151
    %v153 = vpop.f32.mrf.mxu0
    %154 = vmatprep.mubr.f32.mxu0 0.0
    %155 = vmatmul.mubr.f32.gmra.mxu0 %v38
    %v156 = vpop.f32.mrf.mxu0
    %v157 = vadd.f32 0.0, %v156
    %v158 = vpop.f32.mrf.mxu0
    %159 = vmatprep.mubr.f32.mxu0 0.0
    %160 = vmatmul.mubr.f32.gmra.mxu0 %v41
    %v161 = vpop.f32.mrf.mxu0
    %v162 = vadd.f32 0.0, %v161
    %v163 = vpop.f32.mrf.mxu0
    %164 = vmatprep.mubr.f32.mxu0 0.0
    %165 = vmatmul.mubr.f32.gmra.mxu0 %v44
    %v166 = vpop.f32.mrf.mxu0
    %v167 = vadd.f32 0.0, %v166
    %v168 = vpop.f32.mrf.mxu0
    %169 = vmatprep.mubr.f32.mxu0 0.0
    %170 = vmatmul.mubr.f32.gmra.mxu0 %v47
    %v171 = vpop.f32.mrf.mxu0
    %v172 = vadd.f32 0.0, %v171
    %v173 = vpop.f32.mrf.mxu0
    %174 = vmatprep.mubr.f32.mxu0 0.0
    %175 = vmatmul.mubr.f32.gmra.mxu0 %v50
    %v176 = vpop.f32.mrf.mxu0
    %v177 = vadd.f32 0.0, %v176
    %v178 = vpop.f32.mrf.mxu0
    %179 = vmatprep.mubr.f32.mxu0 0.0
    %180 = vmatmul.mubr.f32.gmra.mxu0 %v53
    %v181 = vpop.f32.mrf.mxu0
    %v182 = vadd.f32 0.0, %v181
    %v183 = vpop.f32.mrf.mxu0
    %184 = vmatprep.mubr.f32.mxu0 0.0
    %185 = vmatmul.mubr.f32.gmra.mxu0 %v56
    %v186 = vpop.f32.mrf.mxu0
    %v187 = vadd.f32 0.0, %v186
    %v188 = vpop.f32.mrf.mxu0
    %189 = vmatprep.mubr.f32.mxu0 0.0
    %190 = vmatmul.mubr.f32.gmra.mxu0 %v59
    %v191 = vpop.f32.mrf.mxu0
    %v192 = vadd.f32 0.0, %v191
    %v193 = vpop.f32.mrf.mxu0
    %194 = vmatprep.mubr.f32.mxu0 0.0
    %195 = vmatmul.mubr.f32.gmra.mxu0 %v62
    %v196 = vpop.f32.mrf.mxu0
    %v197 = vadd.f32 0.0, %v196
    %v198 = vpop.f32.mrf.mxu0
    %199 = vmatprep.mubr.f32.mxu0 0.0
    %200 = vmatmul.mubr.f32.gmra.mxu0 %v65
    %v201 = vpop.f32.mrf.mxu0
    %v202 = vadd.f32 0.0, %v201
    %v203 = vpop.f32.mrf.mxu0
    %204 = vmatprep.mubr.f32.mxu0 0.0
    %205 = vmatmul.mubr.f32.gmra.mxu0 %v68
    %v206 = vpop.f32.mrf.mxu0
    %v207 = vadd.f32 0.0, %v206
    %v208 = vpop.f32.mrf.mxu0
    %209 = vmatprep.mubr.f32.mxu0 0.0
    %210 = vmatmul.mubr.f32.gmra.mxu0 %v71
    %v211 = vpop.f32.mrf.mxu0
    %v212 = vadd.f32 0.0, %v211
    %v213 = vpop.f32.mrf.mxu0
    %214 = vmatprep.mubr.f32.mxu0 0.0
    %215 = vmatmul.mubr.f32.gmra.mxu0 %v74
    %v216 = vpop.f32.mrf.mxu0
    %v217 = vadd.f32 0.0, %v216
    %v218 = vpop.f32.mrf.mxu0
    %219 = vmatprep.mubr.f32.mxu0 0.0
    %220 = vmatmul.mubr.f32.gmra.mxu0 %v77
    %v221 = vpop.f32.mrf.mxu0
    %v222 = vadd.f32 0.0, %v221
    %v223 = vpop.f32.mrf.mxu0
    %224 = vmatprep.mubr.f32.mxu0 0.0
    %225 = vmatmul.mubr.f32.gmra.mxu0 %v80
    %v226 = vpop.f32.mrf.mxu0
    %v227 = vadd.f32 0.0, %v226
    %v228 = vpop.f32.mrf.mxu0
    %229 = vmatprep.mubr.f32.mxu0 0.0
    %230 = vmatmul.mubr.f32.gmra.mxu0 %v83
    %v231 = vpop.f32.mrf.mxu0
    %v232 = vadd.f32 0.0, %v231
    %v233 = vpop.f32.mrf.mxu0
    %234 = vdwg.mxu0
    %vm235 = vcmask 785408
    %236 = vst.msk [vmem:[#allocation2] sm:$0xff] %vm235, %v152
    %237 = vst.msk [vmem:[#allocation2 + $0x8] sm:$0xff] %vm235, %v157
    %238 = vst.msk [vmem:[#allocation2 + $0x10] sm:$0xff] %vm235, %v162
    %239 = vst.msk [vmem:[#allocation2 + $0x18] sm:$0xff] %vm235, %v167
    %240 = vst.msk [vmem:[#allocation2 + $0x20] sm:$0xff] %vm235, %v172
    %241 = vst.msk [vmem:[#allocation2 + $0x28] sm:$0xff] %vm235, %v177
    %242 = vst.msk [vmem:[#allocation2 + $0x30] sm:$0xff] %vm235, %v182
    %243 = vst.msk [vmem:[#allocation2 + $0x38] sm:$0xff] %vm235, %v187
    %244 = vst.msk [vmem:[#allocation2 + $0x40] sm:$0xff] %vm235, %v192
    %245 = vst.msk [vmem:[#allocation2 + $0x48] sm:$0xff] %vm235, %v197
    %246 = vst.msk [vmem:[#allocation2 + $0x50] sm:$0xff] %vm235, %v202
    %247 = vst.msk [vmem:[#allocation2 + $0x58] sm:$0xff] %vm235, %v207
    %248 = vst.msk [vmem:[#allocation2 + $0x60] sm:$0xff] %vm235, %v212
    %249 = vst.msk [vmem:[#allocation2 + $0x68] sm:$0xff] %vm235, %v217
    %250 = vst.msk [vmem:[#allocation2 + $0x70] sm:$0xff] %vm235, %v222
    %251 = vst.msk [vmem:[#allocation2 + $0x78] sm:$0xff] %vm235, %v227
    %vm252 = vcmask 779264
    %253 = vst.msk [vmem:[#allocation2 + $0x80] sm:$0x3] %vm252, %v232
    // Predicated region
    $region10: #{tpu_custom_call.1} parent=1 // pred_check
      _
    $region11: #{tpu_custom_call.1} parent=1 // pred_check_branch
      %255 = sbr.rel (0) target = $region13
    $region12: #{tpu_custom_call.1} parent=1 // pred_region
      %s257 = ssub.s32 2176, 2176
      %258 = vsyncadd [#allocation3], %s257
      %s259 = sshll.u32 [#allocation2], 4
      %s260 = int_to_ptr.vmem [resolvable:$true] %s259
      %265 = dma.vmem_to_hbm [thread:$0]  %s260, 2176, %s2, [#allocation3], 128, 128, 8
    $region13: #{tpu_custom_call.1} parent=1 // pred_fallthru
      _
    // Predicated region
    $region14: #{tpu_custom_call.1} parent=1 // pred_check
      _
    $region15: #{tpu_custom_call.1} parent=1 // pred_check_branch
      %267 = sbr.rel (0) target = $region17
    $region16: #{tpu_custom_call.1} parent=1 // pred_region
      %268 = dma.done [#allocation3], 2176
    $region17: #{tpu_custom_call.1} parent=1 // pred_fallthru
      _
    %269 = vsyncpa [#allocation3], 1

</llo_original>
